<compile_context>
chip_gen: v6e
topology: v6e:2x2x1
jax: 0.10.0
libtpu: 0.0.40
codegen_flags: <defaults>
</compile_context>

<pallas_src>
import math

import jax
import jax.numpy as jnp
from jax import lax
from jax.experimental import pallas as pl
from jax.experimental.pallas import tpu as pltpu


# ----------------------------- helpers ----------------------------------
def _layernorm(x, g, b, eps=1e-5):
    mu = jnp.mean(x, axis=-1, keepdims=True)
    var = jnp.mean((x - mu) ** 2, axis=-1, keepdims=True)
    return (x - mu) * lax.rsqrt(var + eps) * g + b


def _gelu_tanh(x):
    c = math.sqrt(2.0 / math.pi)
    return 0.5 * x * (1.0 + jnp.tanh(c * (x + 0.044715 * x * x * x)))


def _pick_tile(n, candidates):
    for c in candidates:
        if c <= n and n % c == 0:
            return c
    return n


def _pick_batch_tile(B, S, rows_target=256):
    # TB batch elements per grid step; TB*S rows are fed to every matmul.
    # TB*S must be a multiple of 16 (bf16 sublane tile) unless it is the whole
    # flattened batch (block == full array is always legal).
    legal = [tb for tb in range(1, B + 1)
             if B % tb == 0 and (tb == B or (tb * S) % 16 == 0)]
    fitting = [tb for tb in legal if tb * S <= rows_target]
    return max(fitting) if fitting else min(legal)


# ---------- Kernel A: fused CLIP stand-in + clip_project MLP -------------
def encode_project_kernel(img_ref, wimg_ref, w1_ref, b1_ref, w2_ref, b2_ref,
                          o_ref):
    # CLIP stand-in: single linear image encoder.  # TODO(synk): real ViT-B/16
    feat = jnp.dot(img_ref[...], wimg_ref[...],
                   preferred_element_type=jnp.float32)
    h = jnp.dot(feat.astype(jnp.bfloat16), w1_ref[...],
                preferred_element_type=jnp.float32) + b1_ref[...]
    h = jnp.tanh(h).astype(jnp.bfloat16)
    o_ref[...] = jnp.dot(h, w2_ref[...],
                         preferred_element_type=jnp.float32) + b2_ref[...]


def encode_and_project(img_flat_bf16, wimg, w1, b1, w2, b2):
    B = img_flat_bf16.shape[0]
    O = w2.shape[1]
    return pl.pallas_call(
        encode_project_kernel,
        out_shape=jax.ShapeDtypeStruct((B, O), jnp.float32),
        compiler_params=pltpu.CompilerParams(
            vmem_limit_bytes=32 * 1024 * 1024),
    )(img_flat_bf16, wimg, w1, b1, w2, b2)


# ---- Kernel B: GPT stand-in block (pre-LN attn + FFN + final LN) ---------
def gpt_block_kernel(x_ref, bias_ref,
                     ln1g_ref, ln1b_ref, wq_ref, wk_ref, wv_ref, wo_ref,
                     ln2g_ref, ln2b_ref, wfc1_ref, bfc1_ref, wfc2_ref,
                     bfc2_ref, lnfg_ref, lnfb_ref, h_out_ref):
    x = x_ref[...]                                  # (TN, D) f32, TN = TB*S
    D = x.shape[-1]
    inv_sqrt_d = 1.0 / math.sqrt(D)

    # --- pre-LN self-attention (single head, head_dim = D: stand-in) ---
    h = _layernorm(x, ln1g_ref[...], ln1b_ref[...]).astype(jnp.bfloat16)
    q = (jnp.dot(h, wq_ref[...], preferred_element_type=jnp.float32)
         * inv_sqrt_d).astype(jnp.bfloat16)         # scale folded into q
    k = jnp.dot(h, wk_ref[...],
                preferred_element_type=jnp.float32).astype(jnp.bfloat16)
    v = jnp.dot(h, wv_ref[...],
                preferred_element_type=jnp.float32).astype(jnp.bfloat16)
    # contraction on the last dims -> no transpose through the XLU
    scores = lax.dot_general(q, k,
                             dimension_numbers=(((1,), (1,)), ((), ())),
                             preferred_element_type=jnp.float32)
    # additive bias carries causal + per-sequence block-diag + attention mask
    scores = scores + bias_ref[...]
    scores = scores - jnp.max(scores, axis=-1, keepdims=True)
    e = jnp.exp(scores)
    p = e * pl.reciprocal(jnp.sum(e, axis=-1, keepdims=True), approx=True)
    attn = jnp.dot(p.astype(jnp.bfloat16), v,
                   preferred_element_type=jnp.float32)
    attn = jnp.dot(attn.astype(jnp.bfloat16), wo_ref[...],
                   preferred_element_type=jnp.float32)
    x = x + attn

    # --- pre-LN feed-forward ---
    h2 = _layernorm(x, ln2g_ref[...], ln2b_ref[...]).astype(jnp.bfloat16)
    mlp = jnp.dot(h2, wfc1_ref[...],
                  preferred_element_type=jnp.float32) + bfc1_ref[...]
    mlp = _gelu_tanh(mlp).astype(jnp.bfloat16)
    mlp = jnp.dot(mlp, wfc2_ref[...],
                  preferred_element_type=jnp.float32) + bfc2_ref[...]
    x = x + mlp

    # --- final LN, emit bf16 hidden states for the LM-head kernel ---
    h_out_ref[...] = _layernorm(x, lnfg_ref[...],
                                lnfb_ref[...]).astype(h_out_ref.dtype)


def gpt_block_forward(x_flat, mask, params, *, rows_target=256):
    N, D = x_flat.shape
    B, S = mask.shape
    F = params["wfc1"].shape[1]
    TB = _pick_batch_tile(B, S, rows_target)
    TN = TB * S
    nb = N // TN

    # Additive attention bias (glue JAX): causal + block-diagonal segments
    # (so TB sequences can share one big matmul) + key-side attention mask.
    # Fully-masked query rows degrade to a uniform softmax (garbage outputs),
    # same caveat as the reference stand-in; such positions must not be read.
    r = jnp.arange(TN)[:, None]
    c = jnp.arange(TN)[None, :]
    base = ((r // S) == (c // S)) & (c <= r)                     # (TN, TN)
    keymask = mask.astype(jnp.float32).reshape(nb, TN) > 0.5     # (nb, TN)
    allowed = base[None, :, :] & keymask[:, None, :]
    attn_bias = jnp.where(allowed, 0.0, -1e30).astype(jnp.float32)
    attn_bias = attn_bias.reshape(N, TN)

    def rep2(shape):
        return pl.BlockSpec(shape, lambda i: (0, 0))   # weight: same block every step

    in_specs = [
        pl.BlockSpec((TN, D), lambda i: (i, 0)),       # x rows
        pl.BlockSpec((TN, TN), lambda i: (i, 0)),      # attention bias
        rep2((1, D)), rep2((1, D)),                    # ln1
        rep2((D, D)), rep2((D, D)), rep2((D, D)), rep2((D, D)),  # Wq Wk Wv Wo
        rep2((1, D)), rep2((1, D)),                    # ln2
        rep2((D, F)), rep2((1, F)), rep2((F, D)), rep2((1, D)),  # FFN
        rep2((1, D)), rep2((1, D)),                    # final LN
    ]
    out_spec = pl.BlockSpec((TN, D), lambda i: (i, 0))

    flops = int(2 * N * D * (4 * D + 2 * F) + 4 * N * TN * D)
    transcendentals = int(N * TN + N * F)
    bytes_accessed = int(N * D * 4 + N * TN * 4 + N * D * 2
                         + nb * ((4 * D * D + 2 * D * F) * 2
                                 + (8 * D + F) * 4))

    return pl.pallas_call(
        gpt_block_kernel,
        grid=(nb,),
        in_specs=in_specs,
        out_specs=out_spec,
        out_shape=jax.ShapeDtypeStruct((N, D), jnp.bfloat16),
        compiler_params=pltpu.CompilerParams(
            dimension_semantics=("parallel",),
            vmem_limit_bytes=32 * 1024 * 1024),
        cost_estimate=pl.CostEstimate(flops=flops,
                                      transcendentals=transcendentals,
                                      bytes_accessed=bytes_accessed),
    )(x_flat, attn_bias,
      params["ln1g"], params["ln1b"],
      params["wq"], params["wk"], params["wv"], params["wo"],
      params["ln2g"], params["ln2b"],
      params["wfc1"], params["bfc1"], params["wfc2"], params["bfc2"],
      params["lnfg"], params["lnfb"])


# --------------- Kernel C: tiled LM head (rows x V tiles) -----------------
def lm_head_kernel(h_ref, w_ref, o_ref):
    o_ref[...] = jnp.dot(h_ref[...], w_ref[...],
                         preferred_element_type=jnp.float32)


def lm_head_forward(hidden, wlm):
    N, D = hidden.shape
    V = wlm.shape[1]
    TN = _pick_tile(N, (512, 256, 128, 64, 32, 16))
    TV = _pick_tile(V, (2048, 1024, 512, 256, 128))
    grid = (N // TN, V // TV)
    return pl.pallas_call(
        lm_head_kernel,
        grid=grid,
        in_specs=[pl.BlockSpec((TN, D), lambda i, j: (i, 0)),
                  pl.BlockSpec((D, TV), lambda i, j: (0, j))],
        out_specs=pl.BlockSpec((TN, TV), lambda i, j: (i, j)),
        out_shape=jax.ShapeDtypeStruct((N, V), jnp.float32),
        compiler_params=pltpu.CompilerParams(
            dimension_semantics=("parallel", "parallel"),
            vmem_limit_bytes=32 * 1024 * 1024),
        cost_estimate=pl.CostEstimate(
            flops=int(2 * N * D * V),
            transcendentals=0,
            bytes_accessed=int(N * D * 2 * (V // TV)
                               + D * V * 2 * (N // TN)
                               + N * V * 4)),
    )(hidden, wlm)


# -------------------------- Module forward ------------------------------
def japanese_clip_cap_forward(params, tokens, img, mask=None, labels=None):
    B = tokens.shape[0]
    prefix_length = params["prefix_length"]
    D = params["wte"].shape[1]
    V = params["wlm"].shape[1]

    # CLIP image features + clip_project MLP (one fused Pallas kernel).
    img_flat = img.reshape(B, -1).astype(jnp.bfloat16)
    proj = encode_and_project(img_flat, params["w_img"], params["w1"],
                              params["b1"], params["w2"], params["b2"])
    prefix_projections = proj.reshape(B, prefix_length, D)

    # GPT token embedding lookup (glue gather) + concat with prefix.
    embedding_text = jnp.take(params["wte"], tokens, axis=0)
    embedding_cat = jnp.concatenate([prefix_projections, embedding_text],
                                    axis=1)
    S = embedding_cat.shape[1]
    if mask is None:
        mask = jnp.ones((B, S), jnp.float32)
    mask = mask.astype(jnp.float32)

    # Transformer block (batch folded into matmul rows) + tiled LM head.
    x_flat = embedding_cat.reshape(B * S, D).astype(jnp.float32)
    hidden = gpt_block_forward(x_flat, mask, params)          # (B*S, D) bf16
    logits = lm_head_forward(hidden, params["wlm"]).reshape(B, S, V)

    loss = None
    if labels is not None:
        # HF GPT2-style shifted CE with labels = cat(dummy_zeros, tokens).
        # TODO(synk): loss kept in glue JAX since logits are returned anyway.
        dummy = jnp.zeros((B, prefix_length), dtype=tokens.dtype)
        labels_full = jnp.concatenate([dummy, tokens], axis=1)
        shift_logits = logits[:, :-1, :]
        shift_labels = labels_full[:, 1:]
        logp = jax.nn.log_softmax(shift_logits, axis=-1)
        nll = -jnp.take_along_axis(logp, shift_labels[..., None],
                                   axis=-1)[..., 0]
        loss = jnp.mean(nll)
    return loss, logits


# ------------------------- Parameter init -------------------------------
def init_params(key, *, prefix_length, prefix_size, D, V, img_feat_dim,
                mlp_ratio=4):
    keys = jax.random.split(key, 12)
    H1 = D * prefix_length // 2
    O = D * prefix_length
    F = mlp_ratio * D
    s = 0.02

    def w(k, shape):  # matmul weights stored in bf16 -> halves weight DMA
        return (s * jax.random.normal(k, shape, jnp.float32)).astype(jnp.bfloat16)

    p = {"prefix_length": prefix_length}
    p["w_img"] = w(keys[0], (img_feat_dim, prefix_size))
    p["w1"] = w(keys[1], (prefix_size, H1))
    p["b1"] = jnp.zeros((1, H1), jnp.float32)
    p["w2"] = w(keys[2], (H1, O))
    p["b2"] = jnp.zeros((1, O), jnp.float32)
    p["wte"] = s * jax.random.normal(keys[3], (V, D), jnp.float32)
    p["ln1g"] = jnp.ones((1, D), jnp.float32)
    p["ln1b"] = jnp.zeros((1, D), jnp.float32)
    p["wq"] = w(keys[4], (D, D))
    p["wk"] = w(keys[5], (D, D))
    p["wv"] = w(keys[6], (D, D))
    p["wo"] = w(keys[7], (D, D))
    p["ln2g"] = jnp.ones((1, D), jnp.float32)
    p["ln2b"] = jnp.zeros((1, D), jnp.float32)
    p["wfc1"] = w(keys[8], (D, F))
    p["bfc1"] = jnp.zeros((1, F), jnp.float32)
    p["wfc2"] = w(keys[9], (F, D))
    p["bfc2"] = jnp.zeros((1, D), jnp.float32)
    p["lnfg"] = jnp.ones((1, D), jnp.float32)
    p["lnfb"] = jnp.zeros((1, D), jnp.float32)
    p["wlm"] = w(keys[10], (D, V))
    return p


if __name__ == "__main__":
    key = jax.random.PRNGKey(0)
    B, C, Himg, Wimg = 2, 4, 16, 16
    prefix_length, prefix_size, D, V, T = 4, 128, 128, 384, 8

    k_img, k_tok, k_par = jax.random.split(key, 3)
    img = jax.random.normal(k_img, (B, C, Himg, Wimg), jnp.float32)   # NCHW
    tokens = jax.random.randint(k_tok, (B, T), 0, V, dtype=jnp.int32)
    params = init_params(k_par, prefix_length=prefix_length,
                         prefix_size=prefix_size, D=D, V=V,
                         img_feat_dim=C * Himg * Wimg)
    mask = jnp.ones((B, prefix_length + T), jnp.float32)

    loss, logits = japanese_clip_cap_forward(params, tokens, img,
                                             mask=mask, labels=tokens)
    jax.block_until_ready((loss, logits))
    assert logits.shape == (B, prefix_length + T, V)
    assert bool(jnp.isfinite(loss))
    print("KERNEL_OK")
</pallas_src>

<mosaic_0001>
module attributes {stable_mosaic.version = 11 : i64} {
  func.func @encode_project_kernel(%arg0: memref<2x1024xbf16, #tpu.memory_space<vmem>>, %arg1: memref<1024x128xbf16, #tpu.memory_space<vmem>>, %arg2: memref<128x256xbf16, #tpu.memory_space<vmem>>, %arg3: memref<1x256xf32, #tpu.memory_space<vmem>>, %arg4: memref<256x512xbf16, #tpu.memory_space<vmem>>, %arg5: memref<1x512xf32, #tpu.memory_space<vmem>>, %arg6: memref<2x512xf32, #tpu.memory_space<vmem>>) attributes {dimension_semantics = [], scalar_prefetch = 0 : i64, scratch_operands = 0 : i64, tpu.core_type = #tpu.core_type<tc>} {
    %c0 = arith.constant 0 : index
    %c0_0 = arith.constant 0 : index
    %0 = vector.load %arg0[%c0, %c0_0] : memref<2x1024xbf16, #tpu.memory_space<vmem>>, vector<2x1024xbf16>
    %c0_1 = arith.constant 0 : index
    %c0_2 = arith.constant 0 : index
    %1 = vector.load %arg1[%c0_1, %c0_2] : memref<1024x128xbf16, #tpu.memory_space<vmem>>, vector<1024x128xbf16>
    %cst = arith.constant dense<0.000000e+00> : vector<2x128xf32>
    %2 = tpu.matmul %0, %1, %cst {dimension_numbers = #tpu.dot_dimension_numbers<[1], [0], [0], [1], [0, 0, 1, 1], [], []>} : vector<2x1024xbf16>, vector<1024x128xbf16>, vector<2x128xf32> -> vector<2x128xf32>
    %3 = arith.truncf %2 : vector<2x128xf32> to vector<2x128xbf16>
    %c0_3 = arith.constant 0 : index
    %c0_4 = arith.constant 0 : index
    %4 = vector.load %arg2[%c0_3, %c0_4] : memref<128x256xbf16, #tpu.memory_space<vmem>>, vector<128x256xbf16>
    %cst_5 = arith.constant dense<0.000000e+00> : vector<2x256xf32>
    %5 = tpu.matmul %3, %4, %cst_5 {dimension_numbers = #tpu.dot_dimension_numbers<[1], [0], [0], [1], [0, 0, 1, 1], [], []>} : vector<2x128xbf16>, vector<128x256xbf16>, vector<2x256xf32> -> vector<2x256xf32>
    %c0_6 = arith.constant 0 : index
    %c0_7 = arith.constant 0 : index
    %6 = vector.load %arg3[%c0_6, %c0_7] : memref<1x256xf32, #tpu.memory_space<vmem>>, vector<1x256xf32>
    %7 = vector.broadcast %6 : vector<1x256xf32> to vector<2x256xf32>
    %8 = arith.addf %5, %7 : vector<2x256xf32>
    %9 = math.tanh %8 : vector<2x256xf32>
    %10 = arith.truncf %9 : vector<2x256xf32> to vector<2x256xbf16>
    %c0_8 = arith.constant 0 : index
    %c0_9 = arith.constant 0 : index
    %11 = vector.load %arg4[%c0_8, %c0_9] : memref<256x512xbf16, #tpu.memory_space<vmem>>, vector<256x512xbf16>
    %cst_10 = arith.constant dense<0.000000e+00> : vector<2x512xf32>
    %12 = tpu.matmul %10, %11, %cst_10 {dimension_numbers = #tpu.dot_dimension_numbers<[1], [0], [0], [1], [0, 0, 1, 1], [], []>} : vector<2x256xbf16>, vector<256x512xbf16>, vector<2x512xf32> -> vector<2x512xf32>
    %c0_11 = arith.constant 0 : index
    %c0_12 = arith.constant 0 : index
    %13 = vector.load %arg5[%c0_11, %c0_12] : memref<1x512xf32, #tpu.memory_space<vmem>>, vector<1x512xf32>
    %14 = vector.broadcast %13 : vector<1x512xf32> to vector<2x512xf32>
    %15 = arith.addf %12, %14 : vector<2x512xf32>
    %c0_13 = arith.constant 0 : index
    %c0_14 = arith.constant 0 : index
    %16 = vector.load %arg6[%c0_13, %c0_14] : memref<2x512xf32, #tpu.memory_space<vmem>>, vector<2x512xf32>
    tpu.vector_store %arg6[%c0_13, %c0_14], %15 {strides = array<i32>} : memref<2x512xf32, #tpu.memory_space<vmem>>, vector<2x512xf32>,
    return
  }
}

</mosaic_0001>

<llo_original>
// kernel: tpu_custom_call.1
$region0: #{tpu_custom_call.1}
  #allocation0 [shape = 'u32[]', space=smem, size = 0x4, offset = 0x4, fixed_abs, tag = 'smem constant byte address 0x4 - core index']
  #allocation1 [shape = 'u32[144,128]{1,0:T(1,128)}', space=vmem, size = 0x12000, scoped, tag = 'internal scratch']
  %s0 = inlined_call_operand.hbm [shape: bf16[2,1024], index: 0, kind: input, shape index: {}]
  %s1 = inlined_call_operand.hbm [shape: bf16[1024,128], index: 1, kind: input, shape index: {}]
  %s2 = inlined_call_operand.hbm [shape: bf16[128,256], index: 2, kind: input, shape index: {}]
  %s3 = inlined_call_operand.vmem [shape: f32[1,256], index: 3, kind: input, shape index: {}]
  %s4 = inlined_call_operand.hbm [shape: bf16[256,512], index: 4, kind: input, shape index: {}]
  %s5 = inlined_call_operand.vmem [shape: f32[1,512], index: 5, kind: input, shape index: {}]
  %s6 = inlined_call_operand.hbm [shape: f32[2,512], index: 6, kind: output, shape index: {}]
  %s7 = sld [smem:[#allocation0]]
  $region50: #{tpu_custom_call.1} parent=0
    _
  %s9 = ssub.s32 1, %s7
  %s10 = scalar_select 0, %s9, %s7
  $region1: #{tpu_custom_call.1} parent=0
    #allocation2 [shape = 'u8[4096]{0}', space=vmem, size = 0x1000, scoped, tag = 'input window, operand 0, single buffered']
    #allocation3 [shape = 's32[1]{0}', space=sflag, size = 0x4, scoped, tag = 'scoped memory for tpu_custom_call.1']
    #allocation4 [shape = 's32[1]{0}', space=sflag, size = 0x4, scoped, tag = 'scoped memory for tpu_custom_call.1']
    #allocation5 [shape = 'u8[262144]{0}', space=vmem, size = 0x40000, scoped, tag = 'input window, operand 1, single buffered']
    #allocation6 [shape = 's32[1]{0}', space=sflag, size = 0x4, scoped, tag = 'scoped memory for tpu_custom_call.1']
    #allocation7 [shape = 'u8[65536]{0}', space=vmem, size = 0x10000, scoped, tag = 'input window, operand 2, single buffered']
    #allocation8 [shape = 'u8[262144]{0}', space=vmem, size = 0x40000, scoped, tag = 'input window, operand 4, single buffered']
    #allocation9 [shape = 's32[1]{0}', space=sflag, size = 0x4, scoped, tag = 'scoped memory for tpu_custom_call.1']
    #allocation10 [shape = 'u8[4096]{0}', space=vmem, size = 0x1000, scoped, tag = 'output window, operand 0, single buffered']
    %11 = vsyncpa [#allocation3], 0
    %12 = vsyncpa [#allocation6], 0
    %13 = vsyncpa [#allocation9], 0
    %14 = vsyncpa [#allocation4], 0
    // Predicated region
    $region2: #{tpu_custom_call.1} parent=1 // pred_check
      _
    $region3: #{tpu_custom_call.1} parent=1 // pred_check_branch
      %16 = sbr.rel (0) target = $region5
    $region4: #{tpu_custom_call.1} parent=1 // pred_region
      %s18 = ssub.s32 128, 128
      %19 = vsyncadd [#allocation3], %s18
      %s21 = sshll.u32 [#allocation2], 4
      %s22 = int_to_ptr.vmem [resolvable:$true] %s21
      %24 = dma.hbm_to_vmem [thread:$0]  %s0, 128, %s22, [#allocation3]
    $region5: #{tpu_custom_call.1} parent=1 // pred_fallthru
      _
    // Predicated region
    $region6: #{tpu_custom_call.1} parent=1 // pred_check
      _
    $region7: #{tpu_custom_call.1} parent=1 // pred_check_branch
      %26 = sbr.rel (0) target = $region9
    $region8: #{tpu_custom_call.1} parent=1 // pred_region
      %s28 = ssub.s32 8192, 8192
      %29 = vsyncadd [#allocation6], %s28
      %s30 = sshll.u32 [#allocation5], 4
      %s31 = int_to_ptr.vmem [resolvable:$true] %s30
      %36 = dma.hbm_to_vmem [thread:$0]  %s1, 8192, %s31, [#allocation6], 64, 64, 4
    $region9: #{tpu_custom_call.1} parent=1 // pred_fallthru
      _
    // Predicated region
    $region10: #{tpu_custom_call.1} parent=1 // pred_check
      _
    $region11: #{tpu_custom_call.1} parent=1 // pred_check_branch
      %38 = sbr.rel (0) target = $region13
    $region12: #{tpu_custom_call.1} parent=1 // pred_region
      %s40 = ssub.s32 2048, 2048
      %41 = vsyncadd [#allocation6], %s40
      %s42 = sshll.u32 [#allocation7], 4
      %s43 = int_to_ptr.vmem [resolvable:$true] %s42
      %48 = dma.hbm_to_vmem [thread:$0]  %s2, 2048, %s43, [#allocation6], 128, 128, 8
    $region13: #{tpu_custom_call.1} parent=1 // pred_fallthru
      _
    // Predicated region
    $region14: #{tpu_custom_call.1} parent=1 // pred_check
      _
    $region15: #{tpu_custom_call.1} parent=1 // pred_check_branch
      %50 = sbr.rel (0) target = $region17
    $region16: #{tpu_custom_call.1} parent=1 // pred_region
      _
    $region17: #{tpu_custom_call.1} parent=1 // pred_fallthru
      _
    // Predicated region
    $region18: #{tpu_custom_call.1} parent=1 // pred_check
      _
    $region19: #{tpu_custom_call.1} parent=1 // pred_check_branch
      %52 = sbr.rel (0) target = $region21
    $region20: #{tpu_custom_call.1} parent=1 // pred_region
      %s54 = ssub.s32 8192, 8192
      %55 = vsyncadd [#allocation9], %s54
      %s56 = sshll.u32 [#allocation8], 4
      %s57 = int_to_ptr.vmem [resolvable:$true] %s56
      %62 = dma.hbm_to_vmem [thread:$0]  %s4, 8192, %s57, [#allocation9], 256, 256, 16
    $region21: #{tpu_custom_call.1} parent=1 // pred_fallthru
      _
    // Predicated region
    $region22: #{tpu_custom_call.1} parent=1 // pred_check
      _
    $region23: #{tpu_custom_call.1} parent=1 // pred_check_branch
      %64 = sbr.rel (0) target = $region25
    $region24: #{tpu_custom_call.1} parent=1 // pred_region
      _
    $region25: #{tpu_custom_call.1} parent=1 // pred_fallthru
      _
    // Predicated region
    $region26: #{tpu_custom_call.1} parent=1 // pred_check
      _
    $region27: #{tpu_custom_call.1} parent=1 // pred_check_branch
      %66 = sbr.rel (0) target = $region29
    $region28: #{tpu_custom_call.1} parent=1 // pred_region
      %67 = dma.done [#allocation3], 128
    $region29: #{tpu_custom_call.1} parent=1 // pred_fallthru
      _
    // Predicated region
    $region30: #{tpu_custom_call.1} parent=1 // pred_check
      _
    $region31: #{tpu_custom_call.1} parent=1 // pred_check_branch
      %69 = sbr.rel (0) target = $region33
    $region32: #{tpu_custom_call.1} parent=1 // pred_region
      %70 = dma.done [#allocation6], 8192
    $region33: #{tpu_custom_call.1} parent=1 // pred_fallthru
      _
    // Predicated region
    $region34: #{tpu_custom_call.1} parent=1 // pred_check
      _
    $region35: #{tpu_custom_call.1} parent=1 // pred_check_branch
      %72 = sbr.rel (0) target = $region37
    $region36: #{tpu_custom_call.1} parent=1 // pred_region
      %73 = dma.done [#allocation6], 2048
    $region37: #{tpu_custom_call.1} parent=1 // pred_fallthru
      _
    // Predicated region
    $region38: #{tpu_custom_call.1} parent=1 // pred_check
      _
    $region39: #{tpu_custom_call.1} parent=1 // pred_check_branch
      %75 = sbr.rel (0) target = $region41
    $region40: #{tpu_custom_call.1} parent=1 // pred_region
      %76 = dma.done [#allocation9], 8192
    $region41: #{tpu_custom_call.1} parent=1 // pred_fallthru
      _
    %v78 = vld [vmem:[#allocation2] sm:$0xff]
    %v79 = vld [vmem:[#allocation5] sm:$0xf]
    %v80 = vld [vmem:[#allocation5 + $0x4] sm:$0xf]
    %v81 = vld [vmem:[#allocation5 + $0x8] sm:$0xf]
    %v82 = vld [vmem:[#allocation5 + $0xc] sm:$0xf]
    %v83 = vld [vmem:[#allocation5 + $0x10] sm:$0xf]
    %v84 = vld [vmem:[#allocation5 + $0x14] sm:$0xf]
    %v85 = vld [vmem:[#allocation5 + $0x18] sm:$0xf]
    %v86 = vld [vmem:[#allocation5 + $0x1c] sm:$0xf]
    %v87 = vld [vmem:[#allocation5 + $0x20] sm:$0xf]
    %v88 = vld [vmem:[#allocation5 + $0x24] sm:$0xf]
    %v89 = vld [vmem:[#allocation5 + $0x28] sm:$0xf]
    %v90 = vld [vmem:[#allocation5 + $0x2c] sm:$0xf]
    %v91 = vld [vmem:[#allocation5 + $0x30] sm:$0xf]
    %v92 = vld [vmem:[#allocation5 + $0x34] sm:$0xf]
    %v93 = vld [vmem:[#allocation5 + $0x38] sm:$0xf]
    %v94 = vld [vmem:[#allocation5 + $0x3c] sm:$0xf]
    %v95 = vld [vmem:[#allocation5 + $0x40] sm:$0xf]
    %v96 = vld [vmem:[#allocation5 + $0x44] sm:$0xf]
    %v97 = vld [vmem:[#allocation5 + $0x48] sm:$0xf]
    %v98 = vld [vmem:[#allocation5 + $0x4c] sm:$0xf]
    %v99 = vld [vmem:[#allocation5 + $0x50] sm:$0xf]
    %v100 = vld [vmem:[#allocation5 + $0x54] sm:$0xf]
    %v101 = vld [vmem:[#allocation5 + $0x58] sm:$0xf]
    %v102 = vld [vmem:[#allocation5 + $0x5c] sm:$0xf]
    %v103 = vld [vmem:[#allocation5 + $0x60] sm:$0xf]
    %v104 = vld [vmem:[#allocation5 + $0x64] sm:$0xf]
    %v105 = vld [vmem:[#allocation5 + $0x68] sm:$0xf]
    %v106 = vld [vmem:[#allocation5 + $0x6c] sm:$0xf]
    %v107 = vld [vmem:[#allocation5 + $0x70] sm:$0xf]
    %v108 = vld [vmem:[#allocation5 + $0x74] sm:$0xf]
    %v109 = vld [vmem:[#allocation5 + $0x78] sm:$0xf]
    %v110 = vld [vmem:[#allocation5 + $0x7c] sm:$0xf]
    %v111 = vld [vmem:[#allocation5 + $0x80] sm:$0xf]
    %v112 = vld [vmem:[#allocation5 + $0x84] sm:$0xf]
    %v113 = vld [vmem:[#allocation5 + $0x88] sm:$0xf]
    %v114 = vld [vmem:[#allocation5 + $0x8c] sm:$0xf]
    %v115 = vld [vmem:[#allocation5 + $0x90] sm:$0xf]
    %v116 = vld [vmem:[#allocation5 + $0x94] sm:$0xf]
    %v117 = vld [vmem:[#allocation5 + $0x98] sm:$0xf]
    %v118 = vld [vmem:[#allocation5 + $0x9c] sm:$0xf]
    %v119 = vld [vmem:[#allocation5 + $0xa0] sm:$0xf]
    %v120 = vld [vmem:[#allocation5 + $0xa4] sm:$0xf]
    %v121 = vld [vmem:[#allocation5 + $0xa8] sm:$0xf]
    %v122 = vld [vmem:[#allocation5 + $0xac] sm:$0xf]
    %v123 = vld [vmem:[#allocation5 + $0xb0] sm:$0xf]
    %v124 = vld [vmem:[#allocation5 + $0xb4] sm:$0xf]
    %v125 = vld [vmem:[#allocation5 + $0xb8] sm:$0xf]
    %v126 = vld [vmem:[#allocation5 + $0xbc] sm:$0xf]
    %v127 = vld [vmem:[#allocation5 + $0xc0] sm:$0xf]
    %v128 = vld [vmem:[#allocation5 + $0xc4] sm:$0xf]
    %v129 = vld [vmem:[#allocation5 + $0xc8] sm:$0xf]
    %v130 = vld [vmem:[#allocation5 + $0xcc] sm:$0xf]
    %v131 = vld [vmem:[#allocation5 + $0xd0] sm:$0xf]
    %v132 = vld [vmem:[#allocation5 + $0xd4] sm:$0xf]
    %v133 = vld [vmem:[#allocation5 + $0xd8] sm:$0xf]
    %v134 = vld [vmem:[#allocation5 + $0xdc] sm:$0xf]
    %v135 = vld [vmem:[#allocation5 + $0xe0] sm:$0xf]
    %v136 = vld [vmem:[#allocation5 + $0xe4] sm:$0xf]
    %v137 = vld [vmem:[#allocation5 + $0xe8] sm:$0xf]
    %v138 = vld [vmem:[#allocation5 + $0xec] sm:$0xf]
    %v139 = vld [vmem:[#allocation5 + $0xf0] sm:$0xf]
    %v140 = vld [vmem:[#allocation5 + $0xf4] sm:$0xf]
    %v141 = vld [vmem:[#allocation5 + $0xf8] sm:$0xf]
    %v142 = vld [vmem:[#allocation5 + $0xfc] sm:$0xf]
    %v143 = vld [vmem:[#allocation5 + $0x100] sm:$0xf]
    %v144 = vld [vmem:[#allocation5 + $0x104] sm:$0xf]
    %v145 = vld [vmem:[#allocation5 + $0x108] sm:$0xf]
    %v146 = vld [vmem:[#allocation5 + $0x10c] sm:$0xf]
    %v147 = vld [vmem:[#allocation5 + $0x110] sm:$0xf]
    %v148 = vld [vmem:[#allocation5 + $0x114] sm:$0xf]
    %v149 = vld [vmem:[#allocation5 + $0x118] sm:$0xf]
    %v150 = vld [vmem:[#allocation5 + $0x11c] sm:$0xf]
    %v151 = vld [vmem:[#allocation5 + $0x120] sm:$0xf]
    %v152 = vld [vmem:[#allocation5 + $0x124] sm:$0xf]
    %v153 = vld [vmem:[#allocation5 + $0x128] sm:$0xf]
    %v154 = vld [vmem:[#allocation5 + $0x12c] sm:$0xf]
    %v155 = vld [vmem:[#allocation5 + $0x130] sm:$0xf]
    %v156 = vld [vmem:[#allocation5 + $0x134] sm:$0xf]
    %v157 = vld [vmem:[#allocation5 + $0x138] sm:$0xf]
    %v158 = vld [vmem:[#allocation5 + $0x13c] sm:$0xf]
    %v159 = vld [vmem:[#allocation5 + $0x140] sm:$0xf]
    %v160 = vld [vmem:[#allocation5 + $0x144] sm:$0xf]
    %v161 = vld [vmem:[#allocation5 + $0x148] sm:$0xf]
    %v162 = vld [vmem:[#allocation5 + $0x14c] sm:$0xf]
    %v163 = vld [vmem:[#allocation5 + $0x150] sm:$0xf]
    %v164 = vld [vmem:[#allocation5 + $0x154] sm:$0xf]
    %v165 = vld [vmem:[#allocation5 + $0x158] sm:$0xf]
    %v166 = vld [vmem:[#allocation5 + $0x15c] sm:$0xf]
    %v167 = vld [vmem:[#allocation5 + $0x160] sm:$0xf]
    %v168 = vld [vmem:[#allocation5 + $0x164] sm:$0xf]
    %v169 = vld [vmem:[#allocation5 + $0x168] sm:$0xf]
    %v170 = vld [vmem:[#allocation5 + $0x16c] sm:$0xf]
    %v171 = vld [vmem:[#allocation5 + $0x170] sm:$0xf]
    %v172 = vld [vmem:[#allocation5 + $0x174] sm:$0xf]
    %v173 = vld [vmem:[#allocation5 + $0x178] sm:$0xf]
    %v174 = vld [vmem:[#allocation5 + $0x17c] sm:$0xf]
    %v175 = vld [vmem:[#allocation5 + $0x180] sm:$0xf]
    %v176 = vld [vmem:[#allocation5 + $0x184] sm:$0xf]
    %v177 = vld [vmem:[#allocation5 + $0x188] sm:$0xf]
    %v178 = vld [vmem:[#allocation5 + $0x18c] sm:$0xf]
    %v179 = vld [vmem:[#allocation5 + $0x190] sm:$0xf]
    %v180 = vld [vmem:[#allocation5 + $0x194] sm:$0xf]
    %v181 = vld [vmem:[#allocation5 + $0x198] sm:$0xf]
    %v182 = vld [vmem:[#allocation5 + $0x19c] sm:$0xf]
    %v183 = vld [vmem:[#allocation5 + $0x1a0] sm:$0xf]
    %v184 = vld [vmem:[#allocation5 + $0x1a4] sm:$0xf]
    %v185 = vld [vmem:[#allocation5 + $0x1a8] sm:$0xf]
    %v186 = vld [vmem:[#allocation5 + $0x1ac] sm:$0xf]
    %v187 = vld [vmem:[#allocation5 + $0x1b0] sm:$0xf]
    %v188 = vld [vmem:[#allocation5 + $0x1b4] sm:$0xf]
    %v189 = vld [vmem:[#allocation5 + $0x1b8] sm:$0xf]
    %v190 = vld [vmem:[#allocation5 + $0x1bc] sm:$0xf]
    %v191 = vld [vmem:[#allocation5 + $0x1c0] sm:$0xf]
    %v192 = vld [vmem:[#allocation5 + $0x1c4] sm:$0xf]
    %v193 = vld [vmem:[#allocation5 + $0x1c8] sm:$0xf]
    %v194 = vld [vmem:[#allocation5 + $0x1cc] sm:$0xf]
    %v195 = vld [vmem:[#allocation5 + $0x1d0] sm:$0xf]
    %v196 = vld [vmem:[#allocation5 + $0x1d4] sm:$0xf]
    %v197 = vld [vmem:[#allocation5 + $0x1d8] sm:$0xf]
    %v198 = vld [vmem:[#allocation5 + $0x1dc] sm:$0xf]
    %v199 = vld [vmem:[#allocation5 + $0x1e0] sm:$0xf]
    %v200 = vld [vmem:[#allocation5 + $0x1e4] sm:$0xf]
    %v201 = vld [vmem:[#allocation5 + $0x1e8] sm:$0xf]
    %v202 = vld [vmem:[#allocation5 + $0x1ec] sm:$0xf]
    %v203 = vld [vmem:[#allocation5 + $0x1f0] sm:$0xf]
    %v204 = vld [vmem:[#allocation5 + $0x1f4] sm:$0xf]
    %v205 = vld [vmem:[#allocation5 + $0x1f8] sm:$0xf]
    %v206 = vld [vmem:[#allocation5 + $0x1fc] sm:$0xf]
    %v208 = vcombine.high %v78, %v78
    %v210 = vunpack.c.l.s4 1966171168
    %v211 = vunpack.c.0.s8 %v210
    %v212 = vlaneseq
    %v213 = vshrl.u32 %v212, 7
    %v214 = vsub.s32 %v211, %v213
    %v215 = vrot.slane %v78, %v214
    %v217 = vunpack.c.l.s4 1966171168
    %v218 = vunpack.c.0.s8 %v217
    %v219 = vlaneseq
    %v220 = vshrl.u32 %v219, 7
    %v221 = vsub.s32 %v218, %v220
    %v222 = vrot.slane %v208, %v221
    %v223 = vcombine.high %v215, %v215
    %v224 = vcombine.high %v222, %v222
    %v226 = vunpack.c.l.s4 1966171168
    %v227 = vunpack.c.0.s8 %v226
    %v228 = vlaneseq
    %v229 = vshrl.u32 %v228, 7
    %v230 = vsub.s32 %v227, %v229
    %v231 = vrot.slane %v215, %v230
    %v233 = vunpack.c.l.s4 1966171168
    %v234 = vunpack.c.0.s8 %v233
    %v235 = vlaneseq
    %v236 = vshrl.u32 %v235, 7
    %v237 = vsub.s32 %v234, %v236
    %v238 = vrot.slane %v222, %v237
    %v240 = vunpack.c.l.s4 1966171168
    %v241 = vunpack.c.0.s8 %v240
    %v242 = vlaneseq
    %v243 = vshrl.u32 %v242, 7
    %v244 = vsub.s32 %v241, %v243
    %v245 = vrot.slane %v223, %v244
    %v247 = vunpack.c.l.s4 1966171168
    %v248 = vunpack.c.0.s8 %v247
    %v249 = vlaneseq
    %v250 = vshrl.u32 %v249, 7
    %v251 = vsub.s32 %v248, %v250
    %v252 = vrot.slane %v224, %v251
    %v253 = vcombine.high %v231, %v231
    %v254 = vcombine.high %v238, %v238
    %v255 = vcombine.high %v245, %v245
    %v256 = vcombine.high %v252, %v252
    %v393 = vunpack.c.l.b16 %v79
    %v394 = vunpack.c.l.b16 %v80
    %v395 = vunpack.c.l.b16 %v81
    %v396 = vunpack.c.l.b16 %v82
    %v397 = vunpack.c.l.b16 %v83
    %v398 = vunpack.c.l.b16 %v84
    %v399 = vunpack.c.l.b16 %v85
    %v400 = vunpack.c.l.b16 %v86
    %v401 = vunpack.c.l.b16 %v87
    %v402 = vunpack.c.l.b16 %v88
    %v403 = vunpack.c.l.b16 %v89
    %v404 = vunpack.c.l.b16 %v90
    %v405 = vunpack.c.l.b16 %v91
    %v406 = vunpack.c.l.b16 %v92
    %v407 = vunpack.c.l.b16 %v93
    %v408 = vunpack.c.l.b16 %v94
    %v409 = vunpack.c.l.b16 %v95
    %v410 = vunpack.c.l.b16 %v96
    %v411 = vunpack.c.l.b16 %v97
    %v412 = vunpack.c.l.b16 %v98
    %v413 = vunpack.c.l.b16 %v99
    %v414 = vunpack.c.l.b16 %v100
    %v415 = vunpack.c.l.b16 %v101
    %v416 = vunpack.c.l.b16 %v102
    %v417 = vunpack.c.l.b16 %v103
    %v418 = vunpack.c.l.b16 %v104
    %v419 = vunpack.c.l.b16 %v105
    %v420 = vunpack.c.l.b16 %v106
    %v421 = vunpack.c.l.b16 %v107
    %v422 = vunpack.c.l.b16 %v108
    %v423 = vunpack.c.l.b16 %v109
    %v424 = vunpack.c.l.b16 %v110
    %v425 = vunpack.c.l.b16 %v111
    %v426 = vunpack.c.l.b16 %v112
    %v427 = vunpack.c.l.b16 %v113
    %v428 = vunpack.c.l.b16 %v114
    %v429 = vunpack.c.l.b16 %v115
    %v430 = vunpack.c.l.b16 %v116
    %v431 = vunpack.c.l.b16 %v117
    %v432 = vunpack.c.l.b16 %v118
    %v433 = vunpack.c.l.b16 %v119
    %v434 = vunpack.c.l.b16 %v120
    %v435 = vunpack.c.l.b16 %v121
    %v436 = vunpack.c.l.b16 %v122
    %v437 = vunpack.c.l.b16 %v123
    %v438 = vunpack.c.l.b16 %v124
    %v439 = vunpack.c.l.b16 %v125
    %v440 = vunpack.c.l.b16 %v126
    %v441 = vunpack.c.l.b16 %v127
    %v442 = vunpack.c.l.b16 %v128
    %v443 = vunpack.c.l.b16 %v129
    %v444 = vunpack.c.l.b16 %v130
    %v445 = vunpack.c.l.b16 %v131
    %v446 = vunpack.c.l.b16 %v132
    %v447 = vunpack.c.l.b16 %v133
    %v448 = vunpack.c.l.b16 %v134
    %v449 = vunpack.c.l.b16 %v135
    %v450 = vunpack.c.l.b16 %v136
    %v451 = vunpack.c.l.b16 %v137
    %v452 = vunpack.c.l.b16 %v138
    %v453 = vunpack.c.l.b16 %v139
    %v454 = vunpack.c.l.b16 %v140
    %v455 = vunpack.c.l.b16 %v141
    %v456 = vunpack.c.l.b16 %v142
    %v457 = vunpack.c.l.b16 %v143
    %v458 = vunpack.c.l.b16 %v144
    %v459 = vunpack.c.l.b16 %v145
    %v460 = vunpack.c.l.b16 %v146
    %v461 = vunpack.c.l.b16 %v147
    %v462 = vunpack.c.l.b16 %v148
    %v463 = vunpack.c.l.b16 %v149
    %v464 = vunpack.c.l.b16 %v150
    %v465 = vunpack.c.l.b16 %v151
    %v466 = vunpack.c.l.b16 %v152
    %v467 = vunpack.c.l.b16 %v153
    %v468 = vunpack.c.l.b16 %v154
    %v469 = vunpack.c.l.b16 %v155
    %v470 = vunpack.c.l.b16 %v156
    %v471 = vunpack.c.l.b16 %v157
    %v472 = vunpack.c.l.b16 %v158
    %v473 = vunpack.c.l.b16 %v159
    %v474 = vunpack.c.l.b16 %v160
    %v475 = vunpack.c.l.b16 %v161
    %v476 = vunpack.c.l.b16 %v162
    %v477 = vunpack.c.l.b16 %v163
    %v478 = vunpack.c.l.b16 %v164
    %v479 = vunpack.c.l.b16 %v165
    %v480 = vunpack.c.l.b16 %v166
    %v481 = vunpack.c.l.b16 %v167
    %v482 = vunpack.c.l.b16 %v168
    %v483 = vunpack.c.l.b16 %v169
    %v484 = vunpack.c.l.b16 %v170
    %v485 = vunpack.c.l.b16 %v171
    %v486 = vunpack.c.l.b16 %v172
    %v487 = vunpack.c.l.b16 %v173
    %v488 = vunpack.c.l.b16 %v174
    %v489 = vunpack.c.l.b16 %v175
    %v490 = vunpack.c.l.b16 %v176
    %v491 = vunpack.c.l.b16 %v177
    %v492 = vunpack.c.l.b16 %v178
    %v493 = vunpack.c.l.b16 %v179
    %v494 = vunpack.c.l.b16 %v180
    %v495 = vunpack.c.l.b16 %v181
    %v496 = vunpack.c.l.b16 %v182
    %v497 = vunpack.c.l.b16 %v183
    %v498 = vunpack.c.l.b16 %v184
    %v499 = vunpack.c.l.b16 %v185
    %v500 = vunpack.c.l.b16 %v186
    %v501 = vunpack.c.l.b16 %v187
    %v502 = vunpack.c.l.b16 %v188
    %v503 = vunpack.c.l.b16 %v189
    %v504 = vunpack.c.l.b16 %v190
    %v505 = vunpack.c.l.b16 %v191
    %v506 = vunpack.c.l.b16 %v192
    %v507 = vunpack.c.l.b16 %v193
    %v508 = vunpack.c.l.b16 %v194
    %v509 = vunpack.c.l.b16 %v195
    %v510 = vunpack.c.l.b16 %v196
    %v511 = vunpack.c.l.b16 %v197
    %v512 = vunpack.c.l.b16 %v198
    %v513 = vunpack.c.l.b16 %v199
    %v514 = vunpack.c.l.b16 %v200
    %v515 = vunpack.c.l.b16 %v201
    %v516 = vunpack.c.l.b16 %v202
    %v517 = vunpack.c.l.b16 %v203
    %v518 = vunpack.c.l.b16 %v204
    %v519 = vunpack.c.l.b16 %v205
    %v520 = vunpack.c.l.b16 %v206
    %v521 = vpack.c.b16 %v394, %v393
    %v522 = vpack.c.b16 %v396, %v395
    %v523 = vpack.c.b16 %v398, %v397
    %v524 = vpack.c.b16 %v400, %v399
    %v525 = vpack.c.b16 %v402, %v401
    %v526 = vpack.c.b16 %v404, %v403
    %v527 = vpack.c.b16 %v406, %v405
    %v528 = vpack.c.b16 %v408, %v407
    %v529 = vpack.c.b16 %v410, %v409
    %v530 = vpack.c.b16 %v412, %v411
    %v531 = vpack.c.b16 %v414, %v413
    %v532 = vpack.c.b16 %v416, %v415
    %v533 = vpack.c.b16 %v418, %v417
    %v534 = vpack.c.b16 %v420, %v419
    %v535 = vpack.c.b16 %v422, %v421
    %v536 = vpack.c.b16 %v424, %v423
    %v537 = vpack.c.b16 %v426, %v425
    %v538 = vpack.c.b16 %v428, %v427
    %v539 = vpack.c.b16 %v430, %v429
    %v540 = vpack.c.b16 %v432, %v431
    %v541 = vpack.c.b16 %v434, %v433
    %v542 = vpack.c.b16 %v436, %v435
    %v543 = vpack.c.b16 %v438, %v437
    %v544 = vpack.c.b16 %v440, %v439
    %v545 = vpack.c.b16 %v442, %v441
    %v546 = vpack.c.b16 %v444, %v443
    %v547 = vpack.c.b16 %v446, %v445
    %v548 = vpack.c.b16 %v448, %v447
    %v549 = vpack.c.b16 %v450, %v449
    %v550 = vpack.c.b16 %v452, %v451
    %v551 = vpack.c.b16 %v454, %v453
    %v552 = vpack.c.b16 %v456, %v455
    %v553 = vpack.c.b16 %v458, %v457
    %v554 = vpack.c.b16 %v460, %v459
    %v555 = vpack.c.b16 %v462, %v461
    %v556 = vpack.c.b16 %v464, %v463
    %v557 = vpack.c.b16 %v466, %v465
    %v558 = vpack.c.b16 %v468, %v467
    %v559 = vpack.c.b16 %v470, %v469
    %v560 = vpack.c.b16 %v472, %v471
    %v561 = vpack.c.b16 %v474, %v473
    %v562 = vpack.c.b16 %v476, %v475
    %v563 = vpack.c.b16 %v478, %v477
    %v564 = vpack.c.b16 %v480, %v479
    %v565 = vpack.c.b16 %v482, %v481
    %v566 = vpack.c.b16 %v484, %v483
    %v567 = vpack.c.b16 %v486, %v485
    %v568 = vpack.c.b16 %v488, %v487
    %v569 = vpack.c.b16 %v490, %v489
    %v570 = vpack.c.b16 %v492, %v491
    %v571 = vpack.c.b16 %v494, %v493
    %v572 = vpack.c.b16 %v496, %v495
    %v573 = vpack.c.b16 %v498, %v497
    %v574 = vpack.c.b16 %v500, %v499
    %v575 = vpack.c.b16 %v502, %v501
    %v576 = vpack.c.b16 %v504, %v503
    %v577 = vpack.c.b16 %v506, %v505
    %v578 = vpack.c.b16 %v508, %v507
    %v579 = vpack.c.b16 %v510, %v509
    %v580 = vpack.c.b16 %v512, %v511
    %v581 = vpack.c.b16 %v514, %v513
    %v582 = vpack.c.b16 %v516, %v515
    %v583 = vpack.c.b16 %v518, %v517
    %v584 = vpack.c.b16 %v520, %v519
    %649 = vmatprep.subr.bf16.mxu0 0
    %650 = vmatpush1.bf16.msra.mxu0 %v528
    %651 = vmatprep.subr.bf16.mxu0 0
    %652 = vmatpush1.bf16.msra.mxu0 %v527
    %653 = vmatprep.subr.bf16.mxu0 0
    %654 = vmatpush1.bf16.msra.mxu0 %v526
    %655 = vmatprep.subr.bf16.mxu0 0
    %656 = vmatpush1.bf16.msra.mxu0 %v525
    %657 = vmatprep.subr.bf16.mxu0 0
    %658 = vmatpush1.bf16.msra.mxu0 %v524
    %659 = vmatprep.subr.bf16.mxu0 0
    %660 = vmatpush1.bf16.msra.mxu0 %v523
    %661 = vmatprep.subr.bf16.mxu0 0
    %662 = vmatpush1.bf16.msra.mxu0 %v522
    %663 = vmatprep.subr.bf16.mxu0 0
    %664 = vmatpush1.bf16.msra.mxu0 %v521
    %665 = vmatprep.subr.bf16.mxu0 0
    %666 = vmatpush2.bf16.msra.mxu0 %v536
    %667 = vmatprep.subr.bf16.mxu0 0
    %668 = vmatpush2.bf16.msra.mxu0 %v535
    %669 = vmatprep.subr.bf16.mxu0 0
    %670 = vmatpush2.bf16.msra.mxu0 %v534
    %671 = vmatprep.subr.bf16.mxu0 0
    %672 = vmatpush2.bf16.msra.mxu0 %v533
    %673 = vmatprep.subr.bf16.mxu0 0
    %674 = vmatpush2.bf16.msra.mxu0 %v532
    %675 = vmatprep.subr.bf16.mxu0 0
    %676 = vmatpush2.bf16.msra.mxu0 %v531
    %677 = vmatprep.subr.bf16.mxu0 0
    %678 = vmatpush2.bf16.msra.mxu0 %v530
    %679 = vmatprep.subr.bf16.mxu0 0
    %680 = vmatpush2.bf16.msra.mxu0 %v529
    %681 = vmatprep.mubr.bf16.mxu0 %v245
    %682 = vmatmul.mubr.bf16.gmra.mxu0 %v231
    %v683 = vpop.f32.mrf.mxu0
    %v684 = vadd.f32 0.0, %v683
    %v685 = vpop.f32.mrf.mxu0
    %v686 = vpop.f32.mrf.mxu0
    %v687 = vpop.f32.mrf.mxu0
    %688 = vdwg.mxu0
    %689 = vmatprep.subr.bf16.mxu0 0
    %690 = vmatpush1.bf16.msra.mxu0 %v544
    %691 = vmatprep.subr.bf16.mxu0 0
    %692 = vmatpush1.bf16.msra.mxu0 %v543
    %693 = vmatprep.subr.bf16.mxu0 0
    %694 = vmatpush1.bf16.msra.mxu0 %v542
    %695 = vmatprep.subr.bf16.mxu0 0
    %696 = vmatpush1.bf16.msra.mxu0 %v541
    %697 = vmatprep.subr.bf16.mxu0 0
    %698 = vmatpush1.bf16.msra.mxu0 %v540
    %699 = vmatprep.subr.bf16.mxu0 0
    %700 = vmatpush1.bf16.msra.mxu0 %v539
    %701 = vmatprep.subr.bf16.mxu0 0
    %702 = vmatpush1.bf16.msra.mxu0 %v538
    %703 = vmatprep.subr.bf16.mxu0 0
    %704 = vmatpush1.bf16.msra.mxu0 %v537
    %705 = vmatprep.subr.bf16.mxu0 0
    %706 = vmatpush2.bf16.msra.mxu0 %v552
    %707 = vmatprep.subr.bf16.mxu0 0
    %708 = vmatpush2.bf16.msra.mxu0 %v551
    %709 = vmatprep.subr.bf16.mxu0 0
    %710 = vmatpush2.bf16.msra.mxu0 %v550
    %711 = vmatprep.subr.bf16.mxu0 0
    %712 = vmatpush2.bf16.msra.mxu0 %v549
    %713 = vmatprep.subr.bf16.mxu0 0
    %714 = vmatpush2.bf16.msra.mxu0 %v548
    %715 = vmatprep.subr.bf16.mxu0 0
    %716 = vmatpush2.bf16.msra.mxu0 %v547
    %717 = vmatprep.subr.bf16.mxu0 0
    %718 = vmatpush2.bf16.msra.mxu0 %v546
    %719 = vmatprep.subr.bf16.mxu0 0
    %720 = vmatpush2.bf16.msra.mxu0 %v545
    %721 = vmatprep.mubr.bf16.mxu0 %v255
    %722 = vmatmul.mubr.bf16.gmra.mxu0 %v253
    %v723 = vpop.f32.mrf.mxu0
    %v724 = vadd.f32 %v684, %v723
    %v725 = vpop.f32.mrf.mxu0
    %v726 = vpop.f32.mrf.mxu0
    %v727 = vpop.f32.mrf.mxu0
    %728 = vdwg.mxu0
    %729 = vmatprep.subr.bf16.mxu0 0
    %730 = vmatpush1.bf16.msra.mxu0 %v560
    %731 = vmatprep.subr.bf16.mxu0 0
    %732 = vmatpush1.bf16.msra.mxu0 %v559
    %733 = vmatprep.subr.bf16.mxu0 0
    %734 = vmatpush1.bf16.msra.mxu0 %v558
    %735 = vmatprep.subr.bf16.mxu0 0
    %736 = vmatpush1.bf16.msra.mxu0 %v557
    %737 = vmatprep.subr.bf16.mxu0 0
    %738 = vmatpush1.bf16.msra.mxu0 %v556
    %739 = vmatprep.subr.bf16.mxu0 0
    %740 = vmatpush1.bf16.msra.mxu0 %v555
    %741 = vmatprep.subr.bf16.mxu0 0
    %742 = vmatpush1.bf16.msra.mxu0 %v554
    %743 = vmatprep.subr.bf16.mxu0 0
    %744 = vmatpush1.bf16.msra.mxu0 %v553
    %745 = vmatprep.subr.bf16.mxu0 0
    %746 = vmatpush2.bf16.msra.mxu0 %v568
    %747 = vmatprep.subr.bf16.mxu0 0
    %748 = vmatpush2.bf16.msra.mxu0 %v567
    %749 = vmatprep.subr.bf16.mxu0 0
    %750 = vmatpush2.bf16.msra.mxu0 %v566
    %751 = vmatprep.subr.bf16.mxu0 0
    %752 = vmatpush2.bf16.msra.mxu0 %v565
    %753 = vmatprep.subr.bf16.mxu0 0
    %754 = vmatpush2.bf16.msra.mxu0 %v564
    %755 = vmatprep.subr.bf16.mxu0 0
    %756 = vmatpush2.bf16.msra.mxu0 %v563
    %757 = vmatprep.subr.bf16.mxu0 0
    %758 = vmatpush2.bf16.msra.mxu0 %v562
    %759 = vmatprep.subr.bf16.mxu0 0
    %760 = vmatpush2.bf16.msra.mxu0 %v561
    %761 = vmatprep.mubr.bf16.mxu0 %v252
    %762 = vmatmul.mubr.bf16.gmra.mxu0 %v238
    %v763 = vpop.f32.mrf.mxu0
    %v764 = vadd.f32 %v724, %v763
    %v765 = vpop.f32.mrf.mxu0
    %v766 = vpop.f32.mrf.mxu0
    %v767 = vpop.f32.mrf.mxu0
    %768 = vdwg.mxu0
    %769 = vmatprep.subr.bf16.mxu0 0
    %770 = vmatpush1.bf16.msra.mxu0 %v576
    %771 = vmatprep.subr.bf16.mxu0 0
    %772 = vmatpush1.bf16.msra.mxu0 %v575
    %773 = vmatprep.subr.bf16.mxu0 0
    %774 = vmatpush1.bf16.msra.mxu0 %v574
    %775 = vmatprep.subr.bf16.mxu0 0
    %776 = vmatpush1.bf16.msra.mxu0 %v573
    %777 = vmatprep.subr.bf16.mxu0 0
    %778 = vmatpush1.bf16.msra.mxu0 %v572
    %779 = vmatprep.subr.bf16.mxu0 0
    %780 = vmatpush1.bf16.msra.mxu0 %v571
    %781 = vmatprep.subr.bf16.mxu0 0
    %782 = vmatpush1.bf16.msra.mxu0 %v570
    %783 = vmatprep.subr.bf16.mxu0 0
    %784 = vmatpush1.bf16.msra.mxu0 %v569
    %785 = vmatprep.subr.bf16.mxu0 0
    %786 = vmatpush2.bf16.msra.mxu0 %v584
    %787 = vmatprep.subr.bf16.mxu0 0
    %788 = vmatpush2.bf16.msra.mxu0 %v583
    %789 = vmatprep.subr.bf16.mxu0 0
    %790 = vmatpush2.bf16.msra.mxu0 %v582
    %791 = vmatprep.subr.bf16.mxu0 0
    %792 = vmatpush2.bf16.msra.mxu0 %v581
    %793 = vmatprep.subr.bf16.mxu0 0
    %794 = vmatpush2.bf16.msra.mxu0 %v580
    %795 = vmatprep.subr.bf16.mxu0 0
    %796 = vmatpush2.bf16.msra.mxu0 %v579
    %797 = vmatprep.subr.bf16.mxu0 0
    %798 = vmatpush2.bf16.msra.mxu0 %v578
    %799 = vmatprep.subr.bf16.mxu0 0
    %800 = vmatpush2.bf16.msra.mxu0 %v577
    %801 = vmatprep.mubr.bf16.mxu0 %v256
    %802 = vmatmul.mubr.bf16.gmra.mxu0 %v254
    %v803 = vpop.f32.mrf.mxu0
    %v804 = vadd.f32 %v764, %v803
    %v805 = vpop.f32.mrf.mxu0
    %v806 = vpop.f32.mrf.mxu0
    %v807 = vpop.f32.mrf.mxu0
    %808 = vdwg.mxu0
    %v809 = vpack.c.bf16 %v804, %v804
    %v810 = vld [vmem:[#allocation7] sm:$0xff]
    %v811 = vld [vmem:[#allocation7 + $0x8] sm:$0xff]
    %v812 = vld [vmem:[#allocation7 + $0x10] sm:$0xff]
    %v813 = vld [vmem:[#allocation7 + $0x18] sm:$0xff]
    %v814 = vld [vmem:[#allocation7 + $0x20] sm:$0xff]
    %v815 = vld [vmem:[#allocation7 + $0x28] sm:$0xff]
    %v816 = vld [vmem:[#allocation7 + $0x30] sm:$0xff]
    %v817 = vld [vmem:[#allocation7 + $0x38] sm:$0xff]
    %v818 = vld [vmem:[#allocation7 + $0x40] sm:$0xff]
    %v819 = vld [vmem:[#allocation7 + $0x48] sm:$0xff]
    %v820 = vld [vmem:[#allocation7 + $0x50] sm:$0xff]
    %v821 = vld [vmem:[#allocation7 + $0x58] sm:$0xff]
    %v822 = vld [vmem:[#allocation7 + $0x60] sm:$0xff]
    %v823 = vld [vmem:[#allocation7 + $0x68] sm:$0xff]
    %v824 = vld [vmem:[#allocation7 + $0x70] sm:$0xff]
    %v825 = vld [vmem:[#allocation7 + $0x78] sm:$0xff]
    %v826 = vld [vmem:[%s3] sm:$0x3]
    %v828 = vlaneseq
    %v829 = vshrl.u32 %v828, 7
    %v830 = vsub.s32 0, %v829
    %v831 = vrot.slane %v826, %v830
    %v832 = vlaneseq
    %v833 = vshrl.u32 %v832, 7
    %v834 = vsub.s32 1, %v833
    %v835 = vrot.slane %v826, %v834
    %v854 = vunpack.c.l.b16 %v810
    %v855 = vunpack.c.h.b16 %v810
    %v856 = vunpack.c.l.b16 %v811
    %v857 = vunpack.c.h.b16 %v811
    %v858 = vunpack.c.l.b16 %v812
    %v859 = vunpack.c.h.b16 %v812
    %v860 = vunpack.c.l.b16 %v813
    %v861 = vunpack.c.h.b16 %v813
    %v862 = vunpack.c.l.b16 %v814
    %v863 = vunpack.c.h.b16 %v814
    %v864 = vunpack.c.l.b16 %v815
    %v865 = vunpack.c.h.b16 %v815
    %v866 = vunpack.c.l.b16 %v816
    %v867 = vunpack.c.h.b16 %v816
    %v868 = vunpack.c.l.b16 %v817
    %v869 = vunpack.c.h.b16 %v817
    %v870 = vunpack.c.l.b16 %v818
    %v871 = vunpack.c.h.b16 %v818
    %v872 = vunpack.c.l.b16 %v819
    %v873 = vunpack.c.h.b16 %v819
    %v874 = vunpack.c.l.b16 %v820
    %v875 = vunpack.c.h.b16 %v820
    %v876 = vunpack.c.l.b16 %v821
    %v877 = vunpack.c.h.b16 %v821
    %v878 = vunpack.c.l.b16 %v822
    %v879 = vunpack.c.h.b16 %v822
    %v880 = vunpack.c.l.b16 %v823
    %v881 = vunpack.c.h.b16 %v823
    %v882 = vunpack.c.l.b16 %v824
    %v883 = vunpack.c.h.b16 %v824
    %v884 = vunpack.c.l.b16 %v825
    %v885 = vunpack.c.h.b16 %v825
    %v886 = vpack.c.b16 %v856, %v854
    %v887 = vpack.c.b16 %v857, %v855
    %v888 = vpack.c.b16 %v860, %v858
    %v889 = vpack.c.b16 %v861, %v859
    %v890 = vpack.c.b16 %v864, %v862
    %v891 = vpack.c.b16 %v865, %v863
    %v892 = vpack.c.b16 %v868, %v866
    %v893 = vpack.c.b16 %v869, %v867
    %v894 = vpack.c.b16 %v872, %v870
    %v895 = vpack.c.b16 %v873, %v871
    %v896 = vpack.c.b16 %v876, %v874
    %v897 = vpack.c.b16 %v877, %v875
    %v898 = vpack.c.b16 %v880, %v878
    %v899 = vpack.c.b16 %v881, %v879
    %v900 = vpack.c.b16 %v884, %v882
    %v901 = vpack.c.b16 %v885, %v883
    %918 = vmatprep.subr.bf16.mxu0 %v901
    %919 = vmatpush1.bf16.msra.mxu0 %v900
    %920 = vmatprep.subr.bf16.mxu0 %v899
    %921 = vmatpush1.bf16.msra.mxu0 %v898
    %922 = vmatprep.subr.bf16.mxu0 %v897
    %923 = vmatpush1.bf16.msra.mxu0 %v896
    %924 = vmatprep.subr.bf16.mxu0 %v895
    %925 = vmatpush1.bf16.msra.mxu0 %v894
    %926 = vmatprep.subr.bf16.mxu0 %v893
    %927 = vmatpush1.bf16.msra.mxu0 %v892
    %928 = vmatprep.subr.bf16.mxu0 %v891
    %929 = vmatpush1.bf16.msra.mxu0 %v890
    %930 = vmatprep.subr.bf16.mxu0 %v889
    %931 = vmatpush1.bf16.msra.mxu0 %v888
    %932 = vmatprep.subr.bf16.mxu0 %v887
    %933 = vmatpush1.bf16.msra.mxu0 %v886
    %934 = vmatprep.subr.bf16.mxu0 0
    %935 = vmatpush2.bf16.msra.mxu0 0
    %936 = vmatprep.subr.bf16.mxu0 0
    %937 = vmatpush2.bf16.msra.mxu0 0
    %938 = vmatprep.subr.bf16.mxu0 0
    %939 = vmatpush2.bf16.msra.mxu0 0
    %940 = vmatprep.subr.bf16.mxu0 0
    %941 = vmatpush2.bf16.msra.mxu0 0
    %942 = vmatprep.subr.bf16.mxu0 0
    %943 = vmatpush2.bf16.msra.mxu0 0
    %944 = vmatprep.subr.bf16.mxu0 0
    %945 = vmatpush2.bf16.msra.mxu0 0
    %946 = vmatprep.subr.bf16.mxu0 0
    %947 = vmatpush2.bf16.msra.mxu0 0
    %948 = vmatprep.subr.bf16.mxu0 0
    %949 = vmatpush2.bf16.msra.mxu0 0
    %950 = vmatprep.mubr.bf16.mxu0 0
    %951 = vmatmul.mubr.bf16.gmra.mxu0 %v809
    %v952 = vpop.f32.mrf.mxu0
    %v953 = vadd.f32 %v831, %v952
    %v954 = vpop.f32.mrf.mxu0
    %v955 = vadd.f32 %v835, %v954
    %v956 = vpop.f32.mrf.mxu0
    %v957 = vpop.f32.mrf.mxu0
    %958 = vdwg.mxu0
    %v959 = vtanh.pop %v953
    %v960 = vtanh.pop %v955
    %v961 = vpack.c.bf16 %v959, %v959
    %v962 = vpack.c.bf16 %v960, %v960
    %v963 = vld [vmem:[#allocation8] sm:$0xff]
    %v964 = vld [vmem:[#allocation8 + $0x8] sm:$0xff]
    %v965 = vld [vmem:[#allocation8 + $0x10] sm:$0xff]
    %v966 = vld [vmem:[#allocation8 + $0x18] sm:$0xff]
    %v967 = vld [vmem:[#allocation8 + $0x20] sm:$0xff]
    %v968 = vld [vmem:[#allocation8 + $0x28] sm:$0xff]
    %v969 = vld [vmem:[#allocation8 + $0x30] sm:$0xff]
    %v970 = vld [vmem:[#allocation8 + $0x38] sm:$0xff]
    %v971 = vld [vmem:[#allocation8 + $0x40] sm:$0xff]
    %v972 = vld [vmem:[#allocation8 + $0x48] sm:$0xff]
    %v973 = vld [vmem:[#allocation8 + $0x50] sm:$0xff]
    %v974 = vld [vmem:[#allocation8 + $0x58] sm:$0xff]
    %v975 = vld [vmem:[#allocation8 + $0x60] sm:$0xff]
    %v976 = vld [vmem:[#allocation8 + $0x68] sm:$0xff]
    %v977 = vld [vmem:[#allocation8 + $0x70] sm:$0xff]
    %v978 = vld [vmem:[#allocation8 + $0x78] sm:$0xff]
    %v979 = vld [vmem:[#allocation8 + $0x80] sm:$0xff]
    %v980 = vld [vmem:[#allocation8 + $0x88] sm:$0xff]
    %v981 = vld [vmem:[#allocation8 + $0x90] sm:$0xff]
    %v982 = vld [vmem:[#allocation8 + $0x98] sm:$0xff]
    %v983 = vld [vmem:[#allocation8 + $0xa0] sm:$0xff]
    %v984 = vld [vmem:[#allocation8 + $0xa8] sm:$0xff]
    %v985 = vld [vmem:[#allocation8 + $0xb0] sm:$0xff]
    %v986 = vld [vmem:[#allocation8 + $0xb8] sm:$0xff]
    %v987 = vld [vmem:[#allocation8 + $0xc0] sm:$0xff]
    %v988 = vld [vmem:[#allocation8 + $0xc8] sm:$0xff]
    %v989 = vld [vmem:[#allocation8 + $0xd0] sm:$0xff]
    %v990 = vld [vmem:[#allocation8 + $0xd8] sm:$0xff]
    %v991 = vld [vmem:[#allocation8 + $0xe0] sm:$0xff]
    %v992 = vld [vmem:[#allocation8 + $0xe8] sm:$0xff]
    %v993 = vld [vmem:[#allocation8 + $0xf0] sm:$0xff]
    %v994 = vld [vmem:[#allocation8 + $0xf8] sm:$0xff]
    %v995 = vld [vmem:[#allocation8 + $0x100] sm:$0xff]
    %v996 = vld [vmem:[#allocation8 + $0x108] sm:$0xff]
    %v997 = vld [vmem:[#allocation8 + $0x110] sm:$0xff]
    %v998 = vld [vmem:[#allocation8 + $0x118] sm:$0xff]
    %v999 = vld [vmem:[#allocation8 + $0x120] sm:$0xff]
    %v1000 = vld [vmem:[#allocation8 + $0x128] sm:$0xff]
    %v1001 = vld [vmem:[#allocation8 + $0x130] sm:$0xff]
    %v1002 = vld [vmem:[#allocation8 + $0x138] sm:$0xff]
    %v1003 = vld [vmem:[#allocation8 + $0x140] sm:$0xff]
    %v1004 = vld [vmem:[#allocation8 + $0x148] sm:$0xff]
    %v1005 = vld [vmem:[#allocation8 + $0x150] sm:$0xff]
    %v1006 = vld [vmem:[#allocation8 + $0x158] sm:$0xff]
    %v1007 = vld [vmem:[#allocation8 + $0x160] sm:$0xff]
    %v1008 = vld [vmem:[#allocation8 + $0x168] sm:$0xff]
    %v1009 = vld [vmem:[#allocation8 + $0x170] sm:$0xff]
    %v1010 = vld [vmem:[#allocation8 + $0x178] sm:$0xff]
    %v1011 = vld [vmem:[#allocation8 + $0x180] sm:$0xff]
    %v1012 = vld [vmem:[#allocation8 + $0x188] sm:$0xff]
    %v1013 = vld [vmem:[#allocation8 + $0x190] sm:$0xff]
    %v1014 = vld [vmem:[#allocation8 + $0x198] sm:$0xff]
    %v1015 = vld [vmem:[#allocation8 + $0x1a0] sm:$0xff]
    %v1016 = vld [vmem:[#allocation8 + $0x1a8] sm:$0xff]
    %v1017 = vld [vmem:[#allocation8 + $0x1b0] sm:$0xff]
    %v1018 = vld [vmem:[#allocation8 + $0x1b8] sm:$0xff]
    %v1019 = vld [vmem:[#allocation8 + $0x1c0] sm:$0xff]
    %v1020 = vld [vmem:[#allocation8 + $0x1c8] sm:$0xff]
    %v1021 = vld [vmem:[#allocation8 + $0x1d0] sm:$0xff]
    %v1022 = vld [vmem:[#allocation8 + $0x1d8] sm:$0xff]
    %v1023 = vld [vmem:[#allocation8 + $0x1e0] sm:$0xff]
    %v1024 = vld [vmem:[#allocation8 + $0x1e8] sm:$0xff]
    %v1025 = vld [vmem:[#allocation8 + $0x1f0] sm:$0xff]
    %v1026 = vld [vmem:[#allocation8 + $0x1f8] sm:$0xff]
    %v1027 = vld [vmem:[%s5] sm:$0xf]
    %v1029 = vlaneseq
    %v1030 = vshrl.u32 %v1029, 7
    %v1031 = vsub.s32 0, %v1030
    %v1032 = vrot.slane %v1027, %v1031
    %v1033 = vlaneseq
    %v1034 = vshrl.u32 %v1033, 7
    %v1035 = vsub.s32 1, %v1034
    %v1036 = vrot.slane %v1027, %v1035
    %v1037 = vlaneseq
    %v1038 = vshrl.u32 %v1037, 7
    %v1039 = vsub.s32 2, %v1038
    %v1040 = vrot.slane %v1027, %v1039
    %v1041 = vlaneseq
    %v1042 = vshrl.u32 %v1041, 7
    %v1043 = vsub.s32 3, %v1042
    %v1044 = vrot.slane %v1027, %v1043
    %v1113 = vunpack.c.l.b16 %v963
    %v1114 = vunpack.c.h.b16 %v963
    %v1115 = vunpack.c.l.b16 %v964
    %v1116 = vunpack.c.h.b16 %v964
    %v1117 = vunpack.c.l.b16 %v965
    %v1118 = vunpack.c.h.b16 %v965
    %v1119 = vunpack.c.l.b16 %v966
    %v1120 = vunpack.c.h.b16 %v966
    %v1121 = vunpack.c.l.b16 %v967
    %v1122 = vunpack.c.h.b16 %v967
    %v1123 = vunpack.c.l.b16 %v968
    %v1124 = vunpack.c.h.b16 %v968
    %v1125 = vunpack.c.l.b16 %v969
    %v1126 = vunpack.c.h.b16 %v969
    %v1127 = vunpack.c.l.b16 %v970
    %v1128 = vunpack.c.h.b16 %v970
    %v1129 = vunpack.c.l.b16 %v971
    %v1130 = vunpack.c.h.b16 %v971
    %v1131 = vunpack.c.l.b16 %v972
    %v1132 = vunpack.c.h.b16 %v972
    %v1133 = vunpack.c.l.b16 %v973
    %v1134 = vunpack.c.h.b16 %v973
    %v1135 = vunpack.c.l.b16 %v974
    %v1136 = vunpack.c.h.b16 %v974
    %v1137 = vunpack.c.l.b16 %v975
    %v1138 = vunpack.c.h.b16 %v975
    %v1139 = vunpack.c.l.b16 %v976
    %v1140 = vunpack.c.h.b16 %v976
    %v1141 = vunpack.c.l.b16 %v977
    %v1142 = vunpack.c.h.b16 %v977
    %v1143 = vunpack.c.l.b16 %v978
    %v1144 = vunpack.c.h.b16 %v978
    %v1145 = vunpack.c.l.b16 %v979
    %v1146 = vunpack.c.h.b16 %v979
    %v1147 = vunpack.c.l.b16 %v980
    %v1148 = vunpack.c.h.b16 %v980
    %v1149 = vunpack.c.l.b16 %v981
    %v1150 = vunpack.c.h.b16 %v981
    %v1151 = vunpack.c.l.b16 %v982
    %v1152 = vunpack.c.h.b16 %v982
    %v1153 = vunpack.c.l.b16 %v983
    %v1154 = vunpack.c.h.b16 %v983
    %v1155 = vunpack.c.l.b16 %v984
    %v1156 = vunpack.c.h.b16 %v984
    %v1157 = vunpack.c.l.b16 %v985
    %v1158 = vunpack.c.h.b16 %v985
    %v1159 = vunpack.c.l.b16 %v986
    %v1160 = vunpack.c.h.b16 %v986
    %v1161 = vunpack.c.l.b16 %v987
    %v1162 = vunpack.c.h.b16 %v987
    %v1163 = vunpack.c.l.b16 %v988
    %v1164 = vunpack.c.h.b16 %v988
    %v1165 = vunpack.c.l.b16 %v989
    %v1166 = vunpack.c.h.b16 %v989
    %v1167 = vunpack.c.l.b16 %v990
    %v1168 = vunpack.c.h.b16 %v990
    %v1169 = vunpack.c.l.b16 %v991
    %v1170 = vunpack.c.h.b16 %v991
    %v1171 = vunpack.c.l.b16 %v992
    %v1172 = vunpack.c.h.b16 %v992
    %v1173 = vunpack.c.l.b16 %v993
    %v1174 = vunpack.c.h.b16 %v993
    %v1175 = vunpack.c.l.b16 %v994
    %v1176 = vunpack.c.h.b16 %v994
    %v1177 = vunpack.c.l.b16 %v995
    %v1178 = vunpack.c.h.b16 %v995
    %v1179 = vunpack.c.l.b16 %v996
    %v1180 = vunpack.c.h.b16 %v996
    %v1181 = vunpack.c.l.b16 %v997
    %v1182 = vunpack.c.h.b16 %v997
    %v1183 = vunpack.c.l.b16 %v998
    %v1184 = vunpack.c.h.b16 %v998
    %v1185 = vunpack.c.l.b16 %v999
    %v1186 = vunpack.c.h.b16 %v999
    %v1187 = vunpack.c.l.b16 %v1000
    %v1188 = vunpack.c.h.b16 %v1000
    %v1189 = vunpack.c.l.b16 %v1001
    %v1190 = vunpack.c.h.b16 %v1001
    %v1191 = vunpack.c.l.b16 %v1002
    %v1192 = vunpack.c.h.b16 %v1002
    %v1193 = vunpack.c.l.b16 %v1003
    %v1194 = vunpack.c.h.b16 %v1003
    %v1195 = vunpack.c.l.b16 %v1004
    %v1196 = vunpack.c.h.b16 %v1004
    %v1197 = vunpack.c.l.b16 %v1005
    %v1198 = vunpack.c.h.b16 %v1005
    %v1199 = vunpack.c.l.b16 %v1006
    %v1200 = vunpack.c.h.b16 %v1006
    %v1201 = vunpack.c.l.b16 %v1007
    %v1202 = vunpack.c.h.b16 %v1007
    %v1203 = vunpack.c.l.b16 %v1008
    %v1204 = vunpack.c.h.b16 %v1008
    %v1205 = vunpack.c.l.b16 %v1009
    %v1206 = vunpack.c.h.b16 %v1009
    %v1207 = vunpack.c.l.b16 %v1010
    %v1208 = vunpack.c.h.b16 %v1010
    %v1209 = vunpack.c.l.b16 %v1011
    %v1210 = vunpack.c.h.b16 %v1011
    %v1211 = vunpack.c.l.b16 %v1012
    %v1212 = vunpack.c.h.b16 %v1012
    %v1213 = vunpack.c.l.b16 %v1013
    %v1214 = vunpack.c.h.b16 %v1013
    %v1215 = vunpack.c.l.b16 %v1014
    %v1216 = vunpack.c.h.b16 %v1014
    %v1217 = vunpack.c.l.b16 %v1015
    %v1218 = vunpack.c.h.b16 %v1015
    %v1219 = vunpack.c.l.b16 %v1016
    %v1220 = vunpack.c.h.b16 %v1016
    %v1221 = vunpack.c.l.b16 %v1017
    %v1222 = vunpack.c.h.b16 %v1017
    %v1223 = vunpack.c.l.b16 %v1018
    %v1224 = vunpack.c.h.b16 %v1018
    %v1225 = vunpack.c.l.b16 %v1019
    %v1226 = vunpack.c.h.b16 %v1019
    %v1227 = vunpack.c.l.b16 %v1020
    %v1228 = vunpack.c.h.b16 %v1020
    %v1229 = vunpack.c.l.b16 %v1021
    %v1230 = vunpack.c.h.b16 %v1021
    %v1231 = vunpack.c.l.b16 %v1022
    %v1232 = vunpack.c.h.b16 %v1022
    %v1233 = vunpack.c.l.b16 %v1023
    %v1234 = vunpack.c.h.b16 %v1023
    %v1235 = vunpack.c.l.b16 %v1024
    %v1236 = vunpack.c.h.b16 %v1024
    %v1237 = vunpack.c.l.b16 %v1025
    %v1238 = vunpack.c.h.b16 %v1025
    %v1239 = vunpack.c.l.b16 %v1026
    %v1240 = vunpack.c.h.b16 %v1026
    %v1241 = vpack.c.b16 %v1117, %v1113
    %v1242 = vpack.c.b16 %v1118, %v1114
    %v1243 = vpack.c.b16 %v1119, %v1115
    %v1244 = vpack.c.b16 %v1120, %v1116
    %v1245 = vpack.c.b16 %v1125, %v1121
    %v1246 = vpack.c.b16 %v1126, %v1122
    %v1247 = vpack.c.b16 %v1127, %v1123
    %v1248 = vpack.c.b16 %v1128, %v1124
    %v1249 = vpack.c.b16 %v1133, %v1129
    %v1250 = vpack.c.b16 %v1134, %v1130
    %v1251 = vpack.c.b16 %v1135, %v1131
    %v1252 = vpack.c.b16 %v1136, %v1132
    %v1253 = vpack.c.b16 %v1141, %v1137
    %v1254 = vpack.c.b16 %v1142, %v1138
    %v1255 = vpack.c.b16 %v1143, %v1139
    %v1256 = vpack.c.b16 %v1144, %v1140
    %v1257 = vpack.c.b16 %v1149, %v1145
    %v1258 = vpack.c.b16 %v1150, %v1146
    %v1259 = vpack.c.b16 %v1151, %v1147
    %v1260 = vpack.c.b16 %v1152, %v1148
    %v1261 = vpack.c.b16 %v1157, %v1153
    %v1262 = vpack.c.b16 %v1158, %v1154
    %v1263 = vpack.c.b16 %v1159, %v1155
    %v1264 = vpack.c.b16 %v1160, %v1156
    %v1265 = vpack.c.b16 %v1165, %v1161
    %v1266 = vpack.c.b16 %v1166, %v1162
    %v1267 = vpack.c.b16 %v1167, %v1163
    %v1268 = vpack.c.b16 %v1168, %v1164
    %v1269 = vpack.c.b16 %v1173, %v1169
    %v1270 = vpack.c.b16 %v1174, %v1170
    %v1271 = vpack.c.b16 %v1175, %v1171
    %v1272 = vpack.c.b16 %v1176, %v1172
    %v1273 = vpack.c.b16 %v1181, %v1177
    %v1274 = vpack.c.b16 %v1182, %v1178
    %v1275 = vpack.c.b16 %v1183, %v1179
    %v1276 = vpack.c.b16 %v1184, %v1180
    %v1277 = vpack.c.b16 %v1189, %v1185
    %v1278 = vpack.c.b16 %v1190, %v1186
    %v1279 = vpack.c.b16 %v1191, %v1187
    %v1280 = vpack.c.b16 %v1192, %v1188
    %v1281 = vpack.c.b16 %v1197, %v1193
    %v1282 = vpack.c.b16 %v1198, %v1194
    %v1283 = vpack.c.b16 %v1199, %v1195
    %v1284 = vpack.c.b16 %v1200, %v1196
    %v1285 = vpack.c.b16 %v1205, %v1201
    %v1286 = vpack.c.b16 %v1206, %v1202
    %v1287 = vpack.c.b16 %v1207, %v1203
    %v1288 = vpack.c.b16 %v1208, %v1204
    %v1289 = vpack.c.b16 %v1213, %v1209
    %v1290 = vpack.c.b16 %v1214, %v1210
    %v1291 = vpack.c.b16 %v1215, %v1211
    %v1292 = vpack.c.b16 %v1216, %v1212
    %v1293 = vpack.c.b16 %v1221, %v1217
    %v1294 = vpack.c.b16 %v1222, %v1218
    %v1295 = vpack.c.b16 %v1223, %v1219
    %v1296 = vpack.c.b16 %v1224, %v1220
    %v1297 = vpack.c.b16 %v1229, %v1225
    %v1298 = vpack.c.b16 %v1230, %v1226
    %v1299 = vpack.c.b16 %v1231, %v1227
    %v1300 = vpack.c.b16 %v1232, %v1228
    %v1301 = vpack.c.b16 %v1237, %v1233
    %v1302 = vpack.c.b16 %v1238, %v1234
    %v1303 = vpack.c.b16 %v1239, %v1235
    %v1304 = vpack.c.b16 %v1240, %v1236
    %1369 = vmatprep.subr.bf16.mxu0 %v1270
    %1370 = vmatpush1.bf16.msra.mxu0 %v1269
    %1371 = vmatprep.subr.bf16.mxu0 %v1266
    %1372 = vmatpush1.bf16.msra.mxu0 %v1265
    %1373 = vmatprep.subr.bf16.mxu0 %v1262
    %1374 = vmatpush1.bf16.msra.mxu0 %v1261
    %1375 = vmatprep.subr.bf16.mxu0 %v1258
    %1376 = vmatpush1.bf16.msra.mxu0 %v1257
    %1377 = vmatprep.subr.bf16.mxu0 %v1254
    %1378 = vmatpush1.bf16.msra.mxu0 %v1253
    %1379 = vmatprep.subr.bf16.mxu0 %v1250
    %1380 = vmatpush1.bf16.msra.mxu0 %v1249
    %1381 = vmatprep.subr.bf16.mxu0 %v1246
    %1382 = vmatpush1.bf16.msra.mxu0 %v1245
    %1383 = vmatprep.subr.bf16.mxu0 %v1242
    %1384 = vmatpush1.bf16.msra.mxu0 %v1241
    %1385 = vmatprep.subr.bf16.mxu0 %v1302
    %1386 = vmatpush2.bf16.msra.mxu0 %v1301
    %1387 = vmatprep.subr.bf16.mxu0 %v1298
    %1388 = vmatpush2.bf16.msra.mxu0 %v1297
    %1389 = vmatprep.subr.bf16.mxu0 %v1294
    %1390 = vmatpush2.bf16.msra.mxu0 %v1293
    %1391 = vmatprep.subr.bf16.mxu0 %v1290
    %1392 = vmatpush2.bf16.msra.mxu0 %v1289
    %1393 = vmatprep.subr.bf16.mxu0 %v1286
    %1394 = vmatpush2.bf16.msra.mxu0 %v1285
    %1395 = vmatprep.subr.bf16.mxu0 %v1282
    %1396 = vmatpush2.bf16.msra.mxu0 %v1281
    %1397 = vmatprep.subr.bf16.mxu0 %v1278
    %1398 = vmatpush2.bf16.msra.mxu0 %v1277
    %1399 = vmatprep.subr.bf16.mxu0 %v1274
    %1400 = vmatpush2.bf16.msra.mxu0 %v1273
    %1401 = vmatprep.mubr.bf16.mxu0 %v962
    %1402 = vmatmul.mubr.bf16.gmra.mxu0 %v961
    %v1403 = vpop.f32.mrf.mxu0
    %v1404 = vadd.f32 %v1032, %v1403
    %v1405 = vpop.f32.mrf.mxu0
    %v1406 = vadd.f32 %v1036, %v1405
    %v1407 = vpop.f32.mrf.mxu0
    %v1408 = vpop.f32.mrf.mxu0
    %1409 = vdwg.mxu0
    %1410 = vmatprep.subr.bf16.mxu0 %v1272
    %1411 = vmatpush1.bf16.msra.mxu0 %v1271
    %1412 = vmatprep.subr.bf16.mxu0 %v1268
    %1413 = vmatpush1.bf16.msra.mxu0 %v1267
    %1414 = vmatprep.subr.bf16.mxu0 %v1264
    %1415 = vmatpush1.bf16.msra.mxu0 %v1263
    %1416 = vmatprep.subr.bf16.mxu0 %v1260
    %1417 = vmatpush1.bf16.msra.mxu0 %v1259
    %1418 = vmatprep.subr.bf16.mxu0 %v1256
    %1419 = vmatpush1.bf16.msra.mxu0 %v1255
    %1420 = vmatprep.subr.bf16.mxu0 %v1252
    %1421 = vmatpush1.bf16.msra.mxu0 %v1251
    %1422 = vmatprep.subr.bf16.mxu0 %v1248
    %1423 = vmatpush1.bf16.msra.mxu0 %v1247
    %1424 = vmatprep.subr.bf16.mxu0 %v1244
    %1425 = vmatpush1.bf16.msra.mxu0 %v1243
    %1426 = vmatprep.subr.bf16.mxu0 %v1304
    %1427 = vmatpush2.bf16.msra.mxu0 %v1303
    %1428 = vmatprep.subr.bf16.mxu0 %v1300
    %1429 = vmatpush2.bf16.msra.mxu0 %v1299
    %1430 = vmatprep.subr.bf16.mxu0 %v1296
    %1431 = vmatpush2.bf16.msra.mxu0 %v1295
    %1432 = vmatprep.subr.bf16.mxu0 %v1292
    %1433 = vmatpush2.bf16.msra.mxu0 %v1291
    %1434 = vmatprep.subr.bf16.mxu0 %v1288
    %1435 = vmatpush2.bf16.msra.mxu0 %v1287
    %1436 = vmatprep.subr.bf16.mxu0 %v1284
    %1437 = vmatpush2.bf16.msra.mxu0 %v1283
    %1438 = vmatprep.subr.bf16.mxu0 %v1280
    %1439 = vmatpush2.bf16.msra.mxu0 %v1279
    %1440 = vmatprep.subr.bf16.mxu0 %v1276
    %1441 = vmatpush2.bf16.msra.mxu0 %v1275
    %1442 = vmatprep.mubr.bf16.mxu0 %v962
    %1443 = vmatmul.mubr.bf16.gmra.mxu0 %v961
    %v1444 = vpop.f32.mrf.mxu0
    %v1445 = vadd.f32 %v1040, %v1444
    %v1446 = vpop.f32.mrf.mxu0
    %v1447 = vadd.f32 %v1044, %v1446
    %v1448 = vpop.f32.mrf.mxu0
    %v1449 = vpop.f32.mrf.mxu0
    %1450 = vdwg.mxu0
    %v1455 = vcombine.low %v1404, %v1406
    %v1456 = vcombine.low %v1445, %v1447
    %v1458 = vunpack.c.l.s4 1983009808
    %v1459 = vunpack.c.0.s8 %v1458
    %v1460 = vlaneseq
    %v1461 = vshrl.u32 %v1460, 7
    %v1462 = vsub.s32 %v1459, %v1461
    %v1463 = vrot.slane %v1455, %v1462
    %v1465 = vunpack.c.l.s4 1983009808
    %v1466 = vunpack.c.0.s8 %v1465
    %v1467 = vlaneseq
    %v1468 = vshrl.u32 %v1467, 7
    %v1469 = vsub.s32 %v1466, %v1468
    %v1470 = vrot.slane %v1456, %v1469
    %v1471 = vcombine.low %v1463, %v1470
    %1473 = vst [vmem:[#allocation10] sm:$0xff] %v1471
    // Predicated region
    $region42: #{tpu_custom_call.1} parent=1 // pred_check
      _
    $region43: #{tpu_custom_call.1} parent=1 // pred_check_branch
      %1475 = sbr.rel (0) target = $region45
    $region44: #{tpu_custom_call.1} parent=1 // pred_region
      %s1477 = ssub.s32 128, 128
      %1478 = vsyncadd [#allocation4], %s1477
      %s1480 = sshll.u32 [#allocation10], 4
      %s1481 = int_to_ptr.vmem [resolvable:$true] %s1480
      %1483 = dma.vmem_to_hbm [thread:$0]  %s1481, 128, %s6, [#allocation4]
    $region45: #{tpu_custom_call.1} parent=1 // pred_fallthru
      _
    // Predicated region
    $region46: #{tpu_custom_call.1} parent=1 // pred_check
      _
    $region47: #{tpu_custom_call.1} parent=1 // pred_check_branch
      %1485 = sbr.rel (0) target = $region49
    $region48: #{tpu_custom_call.1} parent=1 // pred_region
      %1486 = dma.done [#allocation4], 128
    $region49: #{tpu_custom_call.1} parent=1 // pred_fallthru
      _
    %1487 = vsyncpa [#allocation3], 1
    %1488 = vsyncpa [#allocation6], 1
    %1489 = vsyncpa [#allocation9], 1
    %1490 = vsyncpa [#allocation4], 1

</llo_original>
